<compile_context>
chip_gen: v7x
topology: tpu7x:2x2x1
jax: 0.10.0
libtpu: 0.0.40
codegen_flags: <defaults>
</compile_context>

<pallas_src>
import functools

import jax
import jax.numpy as jnp
from jax.experimental import pallas as pl
from jax.experimental.pallas import tpu as pltpu


# ----------------------------- Pallas kernel --------------------------------

def _actor_kernel(obs_ref, ids_ref, w1_ref, b1_ref, w2_ref, b2_ref,
                  w3_ref, b3_ref, out_ref, *, state_dim):
    """ActorNet forward on one row tile.

    concat([obs, ids]) @ W1 is computed as obs @ W1[:S] + ids @ W1[S:],
    removing the concatenate entirely.  Weights may be bf16 (v6e/v7x);
    accumulation is always f32 via preferred_element_type.
    """
    w1 = w1_ref[...]
    cdt = w1.dtype                                   # MXU operand dtype
    obs = obs_ref[...].astype(cdt)
    ids = ids_ref[...].astype(cdt)

    # Layer 1: (obs | ids) @ W1 + b1, ReLU   (split matmul == concat matmul)
    h = (jnp.dot(obs, w1[:state_dim, :], preferred_element_type=jnp.float32)
         + jnp.dot(ids, w1[state_dim:, :], preferred_element_type=jnp.float32)
         + b1_ref[...])
    h = jnp.maximum(h, 0.0)

    # Layer 2: Linear + ReLU
    h = jnp.dot(h.astype(cdt), w2_ref[...],
                preferred_element_type=jnp.float32) + b2_ref[...]
    h = jnp.maximum(h, 0.0)

    # Layer 3: Linear + Tanh
    a = jnp.dot(h.astype(cdt), w3_ref[...],
                preferred_element_type=jnp.float32) + b3_ref[...]
    out_ref[...] = jnp.tanh(a).astype(out_ref.dtype)


# ------------------------------- wrapper -------------------------------------

def _round_up(x, m):
    return ((x + m - 1) // m) * m


def actor_net_pallas(obs2d, ids2d, params, *, tile_rows_max=512):
    """obs2d: (B, S) f32; ids2d: (B, n_agents) f32.
    params: [(W1, b1), (W2, b2), (W3, b3)], W1: (S + n_agents, H1), b: (1, D)."""
    (w1, b1), (w2, b2), (w3, b3) = params
    B, S = obs2d.shape
    n_agents = ids2d.shape[1]
    h1, h2, act_dim = w1.shape[1], w2.shape[1], w3.shape[1]

    # Row tiling: sublane-aligned; one block at small B, 512-row tiles at scale.
    tile_b = min(tile_rows_max, _round_up(B, 8))
    b_pad = _round_up(B, tile_b)
    if b_pad != B:
        obs2d = jnp.pad(obs2d, ((0, b_pad - B), (0, 0)))
        ids2d = jnp.pad(ids2d, ((0, b_pad - B), (0, 0)))
    grid = (b_pad // tile_b,)

    def row_spec(d):
        return pl.BlockSpec((tile_b, d), lambda i: (i, 0))

    def full_spec(arr):                  # resident in VMEM across the grid
        return pl.BlockSpec(arr.shape, lambda i: (0, 0))

    flops = 2 * b_pad * ((S + n_agents) * h1 + h1 * h2 + h2 * act_dim)
    param_bytes = sum(int(a.size) * a.dtype.itemsize
                      for a in (w1, b1, w2, b2, w3, b3))
    bytes_accessed = 4 * b_pad * (S + n_agents + act_dim) + param_bytes

    act = pl.pallas_call(
        functools.partial(_actor_kernel, state_dim=S),
        out_shape=jax.ShapeDtypeStruct((b_pad, act_dim), jnp.float32),
        grid=grid,
        in_specs=[row_spec(S), row_spec(n_agents),
                  full_spec(w1), full_spec(b1),
                  full_spec(w2), full_spec(b2),
                  full_spec(w3), full_spec(b3)],
        out_specs=row_spec(act_dim),
        compiler_params=pltpu.CompilerParams(
            dimension_semantics=("parallel",)),
        cost_estimate=pl.CostEstimate(
            flops=flops,
            transcendentals=b_pad * act_dim,
            bytes_accessed=bytes_accessed),
    )(obs2d, ids2d, w1, b1, w2, b2, w3, b3)

    if b_pad != B:
        act = act[:B]
    return act


# --------------------------- Policy (forward only) ---------------------------

def basic_ddpg_policy_forward(observation, agent_ids, actor_params):
    """Equivalent of Basic_DDPG_policy.forward with Basic_Identical representation."""
    outputs = {"state": observation}                  # identity representation
    lead = observation.shape[:-1]
    obs2d = observation.reshape(-1, observation.shape[-1]).astype(jnp.float32)
    ids2d = agent_ids.reshape(-1, agent_ids.shape[-1]).astype(jnp.float32)
    act = actor_net_pallas(obs2d, ids2d, actor_params)
    return outputs, act.reshape(*lead, act.shape[-1])


# ------------------------- deterministic param init --------------------------

def _weights_compute_dtype():
    """bf16 weights on v6e/v7x (full-rate bf16 MXU/VPU); f32 on v5e and older."""
    try:
        kind = jax.devices()[0].device_kind.lower()
    except Exception:
        return jnp.float32
    if any(v in kind for v in ("v2", "v3", "v4", "v5")):
        return jnp.float32
    return jnp.bfloat16


def init_linear(key, fan_in, fan_out, w_dtype):
    """PyTorch nn.Linear default init: U(-1/sqrt(fan_in), 1/sqrt(fan_in))."""
    kw, kb = jax.random.split(key)
    bound = 1.0 / jnp.sqrt(jnp.float32(fan_in))
    w = jax.random.uniform(kw, (fan_in, fan_out), jnp.float32, -bound, bound)
    b = jax.random.uniform(kb, (1, fan_out), jnp.float32, -bound, bound)
    return w.astype(w_dtype), b          # bias stays f32 (added post f32 accum)


def init_actor_params(key, state_dim, n_agents, action_dim, hidden_sizes,
                      w_dtype=None):
    if w_dtype is None:
        w_dtype = _weights_compute_dtype()
    dims = [state_dim + n_agents] + list(hidden_sizes) + [action_dim]
    keys = jax.random.split(key, len(dims) - 1)
    return [init_linear(k, dims[i], dims[i + 1], w_dtype)
            for i, k in enumerate(keys)]


# ----------------------------------- main ------------------------------------

if __name__ == "__main__":
    batch, n_agents, state_dim, action_dim = 2, 4, 16, 4
    actor_hidden_size = [32, 32]

    key = jax.random.PRNGKey(0)
    k_obs, k_params = jax.random.split(key)

    # observation: (batch, n_agents, state_dim); agent_ids: one-hot (batch, n_agents, n_agents)
    observation = jax.random.normal(k_obs, (batch, n_agents, state_dim), jnp.float32)
    agent_ids = jnp.broadcast_to(jnp.eye(n_agents, dtype=jnp.float32),
                                 (batch, n_agents, n_agents))

    actor_params = init_actor_params(k_params, state_dim, n_agents, action_dim,
                                     actor_hidden_size)

    outputs, act = basic_ddpg_policy_forward(observation, agent_ids, actor_params)
    jax.block_until_ready(act)

    # Pure-JAX reference (original concat formulation) for a correctness check.
    def ref_forward(obs, ids, params):
        x = jnp.concatenate([obs, ids], axis=-1)
        (w1, b1), (w2, b2), (w3, b3) = params
        h = jnp.maximum(x @ w1.astype(jnp.float32) + b1, 0.0)
        h = jnp.maximum(h @ w2.astype(jnp.float32) + b2, 0.0)
        return jnp.tanh(h @ w3.astype(jnp.float32) + b3)

    ref = ref_forward(observation, agent_ids, actor_params)
    tol = 1e-1 if actor_params[0][0].dtype == jnp.bfloat16 else 1e-4

    assert act.shape == (batch, n_agents, action_dim)
    assert bool(jnp.all(jnp.abs(act) <= 1.0))          # tanh output range
    assert bool(jnp.max(jnp.abs(act - ref)) < tol)
    print("KERNEL_OK")
</pallas_src>

<mosaic_0001>
module attributes {stable_mosaic.version = 11 : i64} {
  func.func @_actor_kernel(%arg0: i32, %arg1: memref<8x16xf32, #tpu.memory_space<vmem>>, %arg2: memref<8x4xf32, #tpu.memory_space<vmem>>, %arg3: memref<20x32xbf16, #tpu.memory_space<vmem>>, %arg4: memref<1x32xf32, #tpu.memory_space<vmem>>, %arg5: memref<32x32xbf16, #tpu.memory_space<vmem>>, %arg6: memref<1x32xf32, #tpu.memory_space<vmem>>, %arg7: memref<32x4xbf16, #tpu.memory_space<vmem>>, %arg8: memref<1x4xf32, #tpu.memory_space<vmem>>, %arg9: memref<8x4xf32, #tpu.memory_space<vmem>>) attributes {dimension_semantics = [#tpu.dimension_semantics<parallel>], iteration_bounds = array<i64: 1>, scalar_prefetch = 0 : i64, scratch_operands = 0 : i64, tpu.core_type = #tpu.core_type<tc>, window_params = [{transform_indices = @transform_0, window_bounds = array<i64: 8, 16>}, {transform_indices = @transform_1, window_bounds = array<i64: 8, 4>}, {pipeline_mode = #tpu.pipeline_mode<synchronous>, transform_indices = @transform_2, window_bounds = array<i64: 20, 32>}, {pipeline_mode = #tpu.pipeline_mode<synchronous>, transform_indices = @transform_3, window_bounds = array<i64: 1, 32>}, {pipeline_mode = #tpu.pipeline_mode<synchronous>, transform_indices = @transform_4, window_bounds = array<i64: 32, 32>}, {pipeline_mode = #tpu.pipeline_mode<synchronous>, transform_indices = @transform_5, window_bounds = array<i64: 1, 32>}, {pipeline_mode = #tpu.pipeline_mode<synchronous>, transform_indices = @transform_6, window_bounds = array<i64: 32, 4>}, {pipeline_mode = #tpu.pipeline_mode<synchronous>, transform_indices = @transform_7, window_bounds = array<i64: 1, 4>}, {transform_indices = @transform_8, window_bounds = array<i64: 8, 4>}]} {
    %c0 = arith.constant 0 : index
    %c0_0 = arith.constant 0 : index
    %0 = vector.load %arg3[%c0, %c0_0] : memref<20x32xbf16, #tpu.memory_space<vmem>>, vector<20x32xbf16>
    %c0_1 = arith.constant 0 : index
    %c0_2 = arith.constant 0 : index
    %1 = vector.load %arg1[%c0_1, %c0_2] : memref<8x16xf32, #tpu.memory_space<vmem>>, vector<8x16xf32>
    %2 = arith.truncf %1 : vector<8x16xf32> to vector<8x16xbf16>
    %c0_3 = arith.constant 0 : index
    %c0_4 = arith.constant 0 : index
    %3 = vector.load %arg2[%c0_3, %c0_4] : memref<8x4xf32, #tpu.memory_space<vmem>>, vector<8x4xf32>
    %4 = arith.truncf %3 : vector<8x4xf32> to vector<8x4xbf16>
    %5 = vector.extract_strided_slice %0 {offsets = [0, 0], sizes = [16, 32], strides = [1, 1]} : vector<20x32xbf16> to vector<16x32xbf16>
    %cst = arith.constant dense<0.000000e+00> : vector<8x32xf32>
    %6 = tpu.matmul %2, %5, %cst {dimension_numbers = #tpu.dot_dimension_numbers<[1], [0], [0], [1], [0, 0, 1, 1], [], []>} : vector<8x16xbf16>, vector<16x32xbf16>, vector<8x32xf32> -> vector<8x32xf32>
    %7 = vector.extract_strided_slice %0 {offsets = [16, 0], sizes = [4, 32], strides = [1, 1]} : vector<20x32xbf16> to vector<4x32xbf16>
    %cst_5 = arith.constant dense<0.000000e+00> : vector<8x32xf32>
    %8 = tpu.matmul %4, %7, %cst_5 {dimension_numbers = #tpu.dot_dimension_numbers<[1], [0], [0], [1], [0, 0, 1, 1], [], []>} : vector<8x4xbf16>, vector<4x32xbf16>, vector<8x32xf32> -> vector<8x32xf32>
    %9 = arith.addf %6, %8 : vector<8x32xf32>
    %c0_6 = arith.constant 0 : index
    %c0_7 = arith.constant 0 : index
    %10 = vector.load %arg4[%c0_6, %c0_7] : memref<1x32xf32, #tpu.memory_space<vmem>>, vector<1x32xf32>
    %11 = vector.broadcast %10 : vector<1x32xf32> to vector<8x32xf32>
    %12 = arith.addf %9, %11 : vector<8x32xf32>
    %cst_8 = arith.constant 0.000000e+00 : f32
    %13 = vector.broadcast %cst_8 : f32 to vector<8x32xf32>
    %14 = arith.maximumf %12, %13 : vector<8x32xf32>
    %15 = arith.truncf %14 : vector<8x32xf32> to vector<8x32xbf16>
    %c0_9 = arith.constant 0 : index
    %c0_10 = arith.constant 0 : index
    %16 = vector.load %arg5[%c0_9, %c0_10] : memref<32x32xbf16, #tpu.memory_space<vmem>>, vector<32x32xbf16>
    %cst_11 = arith.constant dense<0.000000e+00> : vector<8x32xf32>
    %17 = tpu.matmul %15, %16, %cst_11 {dimension_numbers = #tpu.dot_dimension_numbers<[1], [0], [0], [1], [0, 0, 1, 1], [], []>} : vector<8x32xbf16>, vector<32x32xbf16>, vector<8x32xf32> -> vector<8x32xf32>
    %c0_12 = arith.constant 0 : index
    %c0_13 = arith.constant 0 : index
    %18 = vector.load %arg6[%c0_12, %c0_13] : memref<1x32xf32, #tpu.memory_space<vmem>>, vector<1x32xf32>
    %19 = vector.broadcast %18 : vector<1x32xf32> to vector<8x32xf32>
    %20 = arith.addf %17, %19 : vector<8x32xf32>
    %cst_14 = arith.constant 0.000000e+00 : f32
    %21 = vector.broadcast %cst_14 : f32 to vector<8x32xf32>
    %22 = arith.maximumf %20, %21 : vector<8x32xf32>
    %23 = arith.truncf %22 : vector<8x32xf32> to vector<8x32xbf16>
    %c0_15 = arith.constant 0 : index
    %c0_16 = arith.constant 0 : index
    %24 = vector.load %arg7[%c0_15, %c0_16] : memref<32x4xbf16, #tpu.memory_space<vmem>>, vector<32x4xbf16>
    %cst_17 = arith.constant dense<0.000000e+00> : vector<8x4xf32>
    %25 = tpu.matmul %23, %24, %cst_17 {dimension_numbers = #tpu.dot_dimension_numbers<[1], [0], [0], [1], [0, 0, 1, 1], [], []>} : vector<8x32xbf16>, vector<32x4xbf16>, vector<8x4xf32> -> vector<8x4xf32>
    %c0_18 = arith.constant 0 : index
    %c0_19 = arith.constant 0 : index
    %26 = vector.load %arg8[%c0_18, %c0_19] : memref<1x4xf32, #tpu.memory_space<vmem>>, vector<1x4xf32>
    %27 = vector.broadcast %26 : vector<1x4xf32> to vector<8x4xf32>
    %28 = arith.addf %25, %27 : vector<8x4xf32>
    %29 = math.tanh %28 : vector<8x4xf32>
    %c0_20 = arith.constant 0 : index
    %c0_21 = arith.constant 0 : index
    %30 = vector.load %arg9[%c0_20, %c0_21] : memref<8x4xf32, #tpu.memory_space<vmem>>, vector<8x4xf32>
    tpu.vector_store %arg9[%c0_20, %c0_21], %29 {strides = array<i32>} : memref<8x4xf32, #tpu.memory_space<vmem>>, vector<8x4xf32>,
    return
  }
  func.func @transform_0(%arg0: i32) -> (i32, i32) {
    %c0_i32 = arith.constant 0 : i32
    %c0_i32_0 = arith.constant 0 : i32
    return %arg0, %c0_i32 : i32, i32
  }
  func.func @transform_1(%arg0: i32) -> (i32, i32) {
    %c0_i32 = arith.constant 0 : i32
    %c0_i32_0 = arith.constant 0 : i32
    return %arg0, %c0_i32 : i32, i32
  }
  func.func @transform_2(%arg0: i32) -> (i32, i32) {
    %c0_i32 = arith.constant 0 : i32
    %c0_i32_0 = arith.constant 0 : i32
    %c0_i32_1 = arith.constant 0 : i32
    return %c0_i32, %c0_i32_0 : i32, i32
  }
  func.func @transform_3(%arg0: i32) -> (i32, i32) {
    %c0_i32 = arith.constant 0 : i32
    %c0_i32_0 = arith.constant 0 : i32
    %c0_i32_1 = arith.constant 0 : i32
    return %c0_i32, %c0_i32_0 : i32, i32
  }
  func.func @transform_4(%arg0: i32) -> (i32, i32) {
    %c0_i32 = arith.constant 0 : i32
    %c0_i32_0 = arith.constant 0 : i32
    %c0_i32_1 = arith.constant 0 : i32
    return %c0_i32, %c0_i32_0 : i32, i32
  }
  func.func @transform_5(%arg0: i32) -> (i32, i32) {
    %c0_i32 = arith.constant 0 : i32
    %c0_i32_0 = arith.constant 0 : i32
    %c0_i32_1 = arith.constant 0 : i32
    return %c0_i32, %c0_i32_0 : i32, i32
  }
  func.func @transform_6(%arg0: i32) -> (i32, i32) {
    %c0_i32 = arith.constant 0 : i32
    %c0_i32_0 = arith.constant 0 : i32
    %c0_i32_1 = arith.constant 0 : i32
    return %c0_i32, %c0_i32_0 : i32, i32
  }
  func.func @transform_7(%arg0: i32) -> (i32, i32) {
    %c0_i32 = arith.constant 0 : i32
    %c0_i32_0 = arith.constant 0 : i32
    %c0_i32_1 = arith.constant 0 : i32
    return %c0_i32, %c0_i32_0 : i32, i32
  }
  func.func @transform_8(%arg0: i32) -> (i32, i32) {
    %c0_i32 = arith.constant 0 : i32
    %c0_i32_0 = arith.constant 0 : i32
    return %arg0, %c0_i32 : i32, i32
  }
}

</mosaic_0001>

<llo_original>
// kernel: tpu_custom_call.1
$region0: #{tpu_custom_call.1}
  #allocation0 [shape = 'u32[]', space=smem, size = 0x4, offset = 0x4, fixed_abs, tag = 'smem constant byte address 0x4 - core index']
  #allocation1 [shape = 'u32[144,128]{1,0:T(1,128)}', space=vmem, size = 0x12000, scoped, tag = 'internal scratch']
  %s0 = inlined_call_operand.hbm [shape: f32[8,16], index: 0, kind: input, shape index: {}]
  %s1 = inlined_call_operand.vmem [shape: f32[8,4], index: 1, kind: input, shape index: {}]
  %s2 = inlined_call_operand.vmem [shape: bf16[20,32], index: 2, kind: input, shape index: {}]
  %s3 = inlined_call_operand.vmem [shape: f32[1,32], index: 3, kind: input, shape index: {}]
  %s4 = inlined_call_operand.vmem [shape: bf16[32,32], index: 4, kind: input, shape index: {}]
  %s5 = inlined_call_operand.vmem [shape: f32[1,32], index: 5, kind: input, shape index: {}]
  %s6 = inlined_call_operand.vmem [shape: bf16[32,4], index: 6, kind: input, shape index: {}]
  %s7 = inlined_call_operand.vmem [shape: f32[1,4], index: 7, kind: input, shape index: {}]
  %s8 = inlined_call_operand.vmem [shape: f32[8,4], index: 8, kind: output, shape index: {}]
  %s9 = sld [smem:[#allocation0]]
  $region46: #{tpu_custom_call.1} parent=0
    _
  %s11 = ssub.s32 1, %s9
  %s12 = scalar_select 0, %s11, %s9
  $region1: #{tpu_custom_call.1} parent=0
    #allocation2 [shape = 'u8[4096]{0}', space=vmem, size = 0x1000, scoped, tag = 'input window, operand 0, single buffered']
    #allocation3 [shape = 's32[1]{0}', space=sflag, size = 0x4, scoped, tag = 'scoped memory for tpu_custom_call.1']
    %13 = vsyncpa [#allocation3], 0
    // Predicated region
    $region2: #{tpu_custom_call.1} parent=1 // pred_check
      _
    $region3: #{tpu_custom_call.1} parent=1 // pred_check_branch
      %15 = sbr.rel (0) target = $region5
    $region4: #{tpu_custom_call.1} parent=1 // pred_region
      %s17 = ssub.s32 128, 128
      %18 = vsyncadd [#allocation3], %s17
      %s20 = sshll.u32 [#allocation2], 4
      %s21 = int_to_ptr.vmem [resolvable:$true] %s20
      %23 = dma.hbm_to_vmem [thread:$0]  %s0, 128, %s21, [#allocation3]
    $region5: #{tpu_custom_call.1} parent=1 // pred_fallthru
      _
    // Predicated region
    $region6: #{tpu_custom_call.1} parent=1 // pred_check
      _
    $region7: #{tpu_custom_call.1} parent=1 // pred_check_branch
      %25 = sbr.rel (0) target = $region9
    $region8: #{tpu_custom_call.1} parent=1 // pred_region
      _
    $region9: #{tpu_custom_call.1} parent=1 // pred_fallthru
      _
    // Predicated region
    $region10: #{tpu_custom_call.1} parent=1 // pred_check
      _
    $region11: #{tpu_custom_call.1} parent=1 // pred_check_branch
      %27 = sbr.rel (0) target = $region13
    $region12: #{tpu_custom_call.1} parent=1 // pred_region
      _
    $region13: #{tpu_custom_call.1} parent=1 // pred_fallthru
      _
    // Predicated region
    $region14: #{tpu_custom_call.1} parent=1 // pred_check
      _
    $region15: #{tpu_custom_call.1} parent=1 // pred_check_branch
      %29 = sbr.rel (0) target = $region17
    $region16: #{tpu_custom_call.1} parent=1 // pred_region
      _
    $region17: #{tpu_custom_call.1} parent=1 // pred_fallthru
      _
    // Predicated region
    $region18: #{tpu_custom_call.1} parent=1 // pred_check
      _
    $region19: #{tpu_custom_call.1} parent=1 // pred_check_branch
      %31 = sbr.rel (0) target = $region21
    $region20: #{tpu_custom_call.1} parent=1 // pred_region
      _
    $region21: #{tpu_custom_call.1} parent=1 // pred_fallthru
      _
    // Predicated region
    $region22: #{tpu_custom_call.1} parent=1 // pred_check
      _
    $region23: #{tpu_custom_call.1} parent=1 // pred_check_branch
      %33 = sbr.rel (0) target = $region25
    $region24: #{tpu_custom_call.1} parent=1 // pred_region
      _
    $region25: #{tpu_custom_call.1} parent=1 // pred_fallthru
      _
    // Predicated region
    $region26: #{tpu_custom_call.1} parent=1 // pred_check
      _
    $region27: #{tpu_custom_call.1} parent=1 // pred_check_branch
      %35 = sbr.rel (0) target = $region29
    $region28: #{tpu_custom_call.1} parent=1 // pred_region
      _
    $region29: #{tpu_custom_call.1} parent=1 // pred_fallthru
      _
    // Predicated region
    $region30: #{tpu_custom_call.1} parent=1 // pred_check
      _
    $region31: #{tpu_custom_call.1} parent=1 // pred_check_branch
      %37 = sbr.rel (0) target = $region33
    $region32: #{tpu_custom_call.1} parent=1 // pred_region
      _
    $region33: #{tpu_custom_call.1} parent=1 // pred_fallthru
      _
    // Predicated region
    $region34: #{tpu_custom_call.1} parent=1 // pred_check
      _
    $region35: #{tpu_custom_call.1} parent=1 // pred_check_branch
      %39 = sbr.rel (0) target = $region37
    $region36: #{tpu_custom_call.1} parent=1 // pred_region
      %40 = dma.done [#allocation3], 128
    $region37: #{tpu_custom_call.1} parent=1 // pred_fallthru
      _
    %v42 = vld [vmem:[%s2] sm:$0xf]
    %v43 = vld [vmem:[%s2 + $0x4] sm:$0xf]
    %v44 = vld [vmem:[%s2 + $0x8] sm:$0x3]
    %v45 = vld [vmem:[#allocation2] sm:$0xff]
    %v46 = vpack.c.bf16 %v45, %v45
    %v47 = vld [vmem:[%s1] sm:$0xff]
    %v48 = vpack.c.bf16 %v47, %v47
    %vm49 = vcmask 31744
    %v51 = vsel %vm49, %v48, 0
    %vm53 = vcmask 1041408
    %v55 = vsel %vm53, %v44, 0
    %57 = vmatprep.subr.bf16.mxu0 0
    %58 = vmatpush1.bf16.msra.mxu0 %v55
    %59 = vmatprep.subr.bf16.mxu0 0
    %60 = vmatpush1.bf16.msra.mxu0 0
    %61 = vmatprep.subr.bf16.mxu0 0
    %62 = vmatpush1.bf16.msra.mxu0 0
    %63 = vmatprep.subr.bf16.mxu0 0
    %64 = vmatpush1.bf16.msra.mxu0 0
    %65 = vmatprep.subr.bf16.mxu0 0
    %66 = vmatpush1.bf16.msra.mxu0 0
    %67 = vmatprep.subr.bf16.mxu0 0
    %68 = vmatpush1.bf16.msra.mxu0 0
    %69 = vmatprep.subr.bf16.mxu0 0
    %70 = vmatpush1.bf16.msra.mxu0 0
    %71 = vmatprep.subr.bf16.mxu0 0
    %72 = vmatpush1.bf16.msra.mxu0 0
    %73 = vmatprep.subr.bf16.mxu0 0
    %74 = vmatpush1.bf16.msra.mxu0 0
    %75 = vmatprep.subr.bf16.mxu0 0
    %76 = vmatpush1.bf16.msra.mxu0 0
    %77 = vmatprep.subr.bf16.mxu0 0
    %78 = vmatpush1.bf16.msra.mxu0 0
    %79 = vmatprep.subr.bf16.mxu0 0
    %80 = vmatpush1.bf16.msra.mxu0 0
    %81 = vmatprep.subr.bf16.mxu0 0
    %82 = vmatpush1.bf16.msra.mxu0 0
    %83 = vmatprep.subr.bf16.mxu0 0
    %84 = vmatpush1.bf16.msra.mxu0 0
    %85 = vmatprep.subr.bf16.mxu0 0
    %86 = vmatpush1.bf16.msra.mxu0 0
    %87 = vmatprep.subr.bf16.mxu0 0
    %88 = vmatpush1.bf16.msra.mxu0 0
    %89 = vmatprep.mubr.bf16.mxu0 0
    %90 = vmatmul.mubr.bf16.gmra.mrb[0].mxu0 %v51
    %v91 = vpop.f32.mrb[0].mxu0
    %v92 = vadd.f32 0.0, %v91
    %v93 = vpop.f32.mrb[0].mxu0
    %v94 = vpop.f32.mrb[0].mxu0
    %v95 = vpop.f32.mrb[0].mxu0
    %96 = vdwg.mxu0
    %v99 = vunpack.c.l.b16 %v42
    %v100 = vunpack.c.l.b16 %v43
    %v101 = vpack.c.b16 %v100, %v99
    %vm103 = vcmask 130048
    %v105 = vsel %vm103, %v46, 0
    %107 = vmatprep.subr.bf16.mxu0 0
    %108 = vmatpush1.bf16.msra.mxu0 %v101
    %109 = vmatprep.subr.bf16.mxu0 0
    %110 = vmatpush1.bf16.msra.mxu0 0
    %111 = vmatprep.subr.bf16.mxu0 0
    %112 = vmatpush1.bf16.msra.mxu0 0
    %113 = vmatprep.subr.bf16.mxu0 0
    %114 = vmatpush1.bf16.msra.mxu0 0
    %115 = vmatprep.subr.bf16.mxu0 0
    %116 = vmatpush1.bf16.msra.mxu0 0
    %117 = vmatprep.subr.bf16.mxu0 0
    %118 = vmatpush1.bf16.msra.mxu0 0
    %119 = vmatprep.subr.bf16.mxu0 0
    %120 = vmatpush1.bf16.msra.mxu0 0
    %121 = vmatprep.subr.bf16.mxu0 0
    %122 = vmatpush1.bf16.msra.mxu0 0
    %123 = vmatprep.subr.bf16.mxu0 0
    %124 = vmatpush1.bf16.msra.mxu0 0
    %125 = vmatprep.subr.bf16.mxu0 0
    %126 = vmatpush1.bf16.msra.mxu0 0
    %127 = vmatprep.subr.bf16.mxu0 0
    %128 = vmatpush1.bf16.msra.mxu0 0
    %129 = vmatprep.subr.bf16.mxu0 0
    %130 = vmatpush1.bf16.msra.mxu0 0
    %131 = vmatprep.subr.bf16.mxu0 0
    %132 = vmatpush1.bf16.msra.mxu0 0
    %133 = vmatprep.subr.bf16.mxu0 0
    %134 = vmatpush1.bf16.msra.mxu0 0
    %135 = vmatprep.subr.bf16.mxu0 0
    %136 = vmatpush1.bf16.msra.mxu0 0
    %137 = vmatprep.subr.bf16.mxu0 0
    %138 = vmatpush1.bf16.msra.mxu0 0
    %139 = vmatprep.mubr.bf16.mxu0 0
    %140 = vmatmul.mubr.bf16.gmra.mrb[0].mxu0 %v105
    %v141 = vpop.f32.mrb[0].mxu0
    %v142 = vadd.f32 %v92, %v141
    %v143 = vpop.f32.mrb[0].mxu0
    %v144 = vpop.f32.mrb[0].mxu0
    %v145 = vpop.f32.mrb[0].mxu0
    %146 = vdwg.mxu0
    %v147 = vld [vmem:[%s3] sm:$0x1]
    %v149 = vlaneseq
    %v150 = vshrl.u32 %v149, 7
    %v151 = vsub.s32 0, %v150
    %v152 = vrot.slane %v147, %v151
    %v154 = vadd.f32 %v142, %v152
    %v155 = vmax.f32 %v154, 0.0
    %v156 = vpack.c.bf16 %v155, %v155
    %v157 = vld [vmem:[%s4] sm:$0xf]
    %v158 = vld [vmem:[%s4 + $0x4] sm:$0xf]
    %v159 = vld [vmem:[%s4 + $0x8] sm:$0xf]
    %v160 = vld [vmem:[%s4 + $0xc] sm:$0xf]
    %v161 = vld [vmem:[%s5] sm:$0x1]
    %v163 = vlaneseq
    %v164 = vshrl.u32 %v163, 7
    %v165 = vsub.s32 0, %v164
    %v166 = vrot.slane %v161, %v165
    %v172 = vunpack.c.l.b16 %v157
    %v173 = vunpack.c.l.b16 %v158
    %v174 = vunpack.c.l.b16 %v159
    %v175 = vunpack.c.l.b16 %v160
    %v176 = vpack.c.b16 %v173, %v172
    %v177 = vpack.c.b16 %v175, %v174
    %vm180 = vcmask 261120
    %v182 = vsel %vm180, %v156, 0
    %184 = vmatprep.subr.bf16.mxu0 0
    %185 = vmatpush1.bf16.msra.mxu0 %v176
    %186 = vmatprep.subr.bf16.mxu0 0
    %187 = vmatpush1.bf16.msra.mxu0 %v177
    %188 = vmatprep.subr.bf16.mxu0 0
    %189 = vmatpush1.bf16.msra.mxu0 0
    %190 = vmatprep.subr.bf16.mxu0 0
    %191 = vmatpush1.bf16.msra.mxu0 0
    %192 = vmatprep.subr.bf16.mxu0 0
    %193 = vmatpush1.bf16.msra.mxu0 0
    %194 = vmatprep.subr.bf16.mxu0 0
    %195 = vmatpush1.bf16.msra.mxu0 0
    %196 = vmatprep.subr.bf16.mxu0 0
    %197 = vmatpush1.bf16.msra.mxu0 0
    %198 = vmatprep.subr.bf16.mxu0 0
    %199 = vmatpush1.bf16.msra.mxu0 0
    %200 = vmatprep.subr.bf16.mxu0 0
    %201 = vmatpush1.bf16.msra.mxu0 0
    %202 = vmatprep.subr.bf16.mxu0 0
    %203 = vmatpush1.bf16.msra.mxu0 0
    %204 = vmatprep.subr.bf16.mxu0 0
    %205 = vmatpush1.bf16.msra.mxu0 0
    %206 = vmatprep.subr.bf16.mxu0 0
    %207 = vmatpush1.bf16.msra.mxu0 0
    %208 = vmatprep.subr.bf16.mxu0 0
    %209 = vmatpush1.bf16.msra.mxu0 0
    %210 = vmatprep.subr.bf16.mxu0 0
    %211 = vmatpush1.bf16.msra.mxu0 0
    %212 = vmatprep.subr.bf16.mxu0 0
    %213 = vmatpush1.bf16.msra.mxu0 0
    %214 = vmatprep.subr.bf16.mxu0 0
    %215 = vmatpush1.bf16.msra.mxu0 0
    %216 = vmatprep.mubr.bf16.mxu0 0
    %217 = vmatmul.mubr.bf16.gmra.mrb[0].mxu0 %v182
    %v218 = vpop.f32.mrb[0].mxu0
    %v219 = vadd.f32 %v166, %v218
    %v220 = vpop.f32.mrb[0].mxu0
    %v221 = vpop.f32.mrb[0].mxu0
    %v222 = vpop.f32.mrb[0].mxu0
    %223 = vdwg.mxu0
    %v224 = vmax.f32 %v219, 0.0
    %v225 = vpack.c.bf16 %v224, %v224
    %v226 = vld [vmem:[%s6] sm:$0xf]
    %v227 = vld [vmem:[%s6 + $0x4] sm:$0xf]
    %v228 = vld [vmem:[%s6 + $0x8] sm:$0xf]
    %v229 = vld [vmem:[%s6 + $0xc] sm:$0xf]
    %v230 = vld [vmem:[%s7] sm:$0x1]
    %v232 = vlaneseq
    %v233 = vshrl.u32 %v232, 7
    %v234 = vsub.s32 0, %v233
    %v235 = vrot.slane %v230, %v234
    %v241 = vunpack.c.l.b16 %v226
    %v242 = vunpack.c.l.b16 %v227
    %v243 = vunpack.c.l.b16 %v228
    %v244 = vunpack.c.l.b16 %v229
    %v245 = vpack.c.b16 %v242, %v241
    %v246 = vpack.c.b16 %v244, %v243
    %v250 = vsel %vm180, %v225, 0
    %252 = vmatprep.subr.bf16.mxu0 0
    %253 = vmatpush1.bf16.msra.mxu0 %v245
    %254 = vmatprep.subr.bf16.mxu0 0
    %255 = vmatpush1.bf16.msra.mxu0 %v246
    %256 = vmatprep.subr.bf16.mxu0 0
    %257 = vmatpush1.bf16.msra.mxu0 0
    %258 = vmatprep.subr.bf16.mxu0 0
    %259 = vmatpush1.bf16.msra.mxu0 0
    %260 = vmatprep.subr.bf16.mxu0 0
    %261 = vmatpush1.bf16.msra.mxu0 0
    %262 = vmatprep.subr.bf16.mxu0 0
    %263 = vmatpush1.bf16.msra.mxu0 0
    %264 = vmatprep.subr.bf16.mxu0 0
    %265 = vmatpush1.bf16.msra.mxu0 0
    %266 = vmatprep.subr.bf16.mxu0 0
    %267 = vmatpush1.bf16.msra.mxu0 0
    %268 = vmatprep.subr.bf16.mxu0 0
    %269 = vmatpush1.bf16.msra.mxu0 0
    %270 = vmatprep.subr.bf16.mxu0 0
    %271 = vmatpush1.bf16.msra.mxu0 0
    %272 = vmatprep.subr.bf16.mxu0 0
    %273 = vmatpush1.bf16.msra.mxu0 0
    %274 = vmatprep.subr.bf16.mxu0 0
    %275 = vmatpush1.bf16.msra.mxu0 0
    %276 = vmatprep.subr.bf16.mxu0 0
    %277 = vmatpush1.bf16.msra.mxu0 0
    %278 = vmatprep.subr.bf16.mxu0 0
    %279 = vmatpush1.bf16.msra.mxu0 0
    %280 = vmatprep.subr.bf16.mxu0 0
    %281 = vmatpush1.bf16.msra.mxu0 0
    %282 = vmatprep.subr.bf16.mxu0 0
    %283 = vmatpush1.bf16.msra.mxu0 0
    %284 = vmatprep.mubr.bf16.mxu0 0
    %285 = vmatmul.mubr.bf16.gmra.mrb[0].mxu0 %v250
    %v286 = vpop.f32.mrb[0].mxu0
    %v287 = vadd.f32 %v235, %v286
    %v288 = vpop.f32.mrb[0].mxu0
    %v289 = vpop.f32.mrb[0].mxu0
    %v290 = vpop.f32.mrb[0].mxu0
    %291 = vdwg.mxu0
    %v292 = vtanh.pop %v287
    %293 = vst.msk [vmem:[%s8] sm:$0xff] %vm49, %v292
    // Predicated region
    $region38: #{tpu_custom_call.1} parent=1 // pred_check
      _
    $region39: #{tpu_custom_call.1} parent=1 // pred_check_branch
      %295 = sbr.rel (0) target = $region41
    $region40: #{tpu_custom_call.1} parent=1 // pred_region
      _
    $region41: #{tpu_custom_call.1} parent=1 // pred_fallthru
      _
    // Predicated region
    $region42: #{tpu_custom_call.1} parent=1 // pred_check
      _
    $region43: #{tpu_custom_call.1} parent=1 // pred_check_branch
      %297 = sbr.rel (0) target = $region45
    $region44: #{tpu_custom_call.1} parent=1 // pred_region
      _
    $region45: #{tpu_custom_call.1} parent=1 // pred_fallthru
      _
    %298 = vsyncpa [#allocation3], 1

</llo_original>
